<compile_context>
chip_gen: v5e
topology: v5e:2x2
jax: 0.10.0
libtpu: 0.0.40
codegen_flags: <defaults>
</compile_context>

<pallas_src>
import math

import jax
import jax.numpy as jnp
from jax.experimental import pallas as pl
from jax.experimental.pallas import tpu as pltpu

_LANES = 128
_SUBLANES = 8


def dyt_kernel(alpha_ref, w_ref, b_ref, x_ref, o_ref):
    # alpha_ref: SMEM (1,) f32 scalar
    # w_ref, b_ref: VMEM-resident (1, Df) f32 — broadcast across rows
    # x_ref, o_ref: VMEM (block_rows, Df) tiles (last block may be partial/masked)
    alpha = alpha_ref[0]
    x = x_ref[...].astype(jnp.float32)
    y = jnp.tanh(alpha * x) * w_ref[...] + b_ref[...]   # tanh runs on the EUP slot
    o_ref[...] = y.astype(o_ref.dtype)                  # cast only on the final store


def dyt(x, alpha, weight, bias, *,
        target_tile_bytes=4 * 1024 * 1024,   # per buffer; roofline saturates ~2-4 MiB
        min_grid_steps=8):                   # keep the pipeline / both v7x TCs busy
    """Pallas DyT forward. x: (..., D); alpha: (1,) or scalar; weight/bias: (D,)."""
    orig_shape = x.shape
    D = orig_shape[-1]
    dtype = x.dtype
    itemsize = jnp.dtype(dtype).itemsize

    x2 = x.reshape(-1, D)
    R = x2.shape[0]

    # ---- lane-dense folding: make the last dim a multiple of 128 ----
    k = 1 if D % _LANES == 0 else math.lcm(D, _LANES) // D
    D_f = k * D

    # Pad at most k-1 rows so the fold-reshape is legal (no tile-sized padding).
    R_pad = pl.cdiv(R, k) * k
    pad = R_pad - R
    if pad:
        x2 = jnp.pad(x2, ((0, pad), (0, 0)))
    R_f = R_pad // k
    xf = x2.reshape(R_f, D_f)                # contiguous reshape: free (bitcast)

    # ---- pick the row tile: <= byte budget, and >= min_grid_steps blocks ----
    sub = max(_SUBLANES, 32 // itemsize)     # sublane packing: 8 f32, 16 bf16
    rows_by_bytes = max(1, target_tile_bytes // max(1, D_f * itemsize))
    rows_by_steps = pl.cdiv(R_f, min_grid_steps)
    rows = min(rows_by_bytes, rows_by_steps)
    if rows >= R_f:
        block_rows = R_f                     # tiny array: single full block (allowed)
    else:
        block_rows = max(sub, (rows // sub) * sub)
        block_rows = min(block_rows, R_f)
    grid = (pl.cdiv(R_f, block_rows),)       # partial last block is masked by Pallas

    # weight/bias tiled to the folded lane layout, pre-cast to f32, VMEM-resident.
    wf = jnp.tile(weight.astype(jnp.float32), k).reshape(1, D_f)
    bf = jnp.tile(bias.astype(jnp.float32), k).reshape(1, D_f)
    alpha_s = jnp.asarray(alpha, jnp.float32).reshape(1)

    # ---- VMEM limit derived from actual usage (+ f32 temporaries + margin) ----
    tile_bytes = block_rows * D_f * itemsize
    f32_tmp_bytes = 2 * block_rows * D_f * 4       # upcast-x / pre-cast-y temporaries
    wb_bytes = 2 * D_f * 4
    vmem_limit = 4 * tile_bytes + f32_tmp_bytes + wb_bytes + (4 << 20)
    vmem_limit = int(min(max(vmem_limit, 8 << 20), 64 << 20))

    out = pl.pallas_call(
        dyt_kernel,
        out_shape=jax.ShapeDtypeStruct((R_f, D_f), dtype),
        grid=grid,
        in_specs=[
            pl.BlockSpec(memory_space=pltpu.SMEM),              # alpha (scalar)
            pl.BlockSpec(memory_space=pltpu.VMEM),              # weight (resident, f32)
            pl.BlockSpec(memory_space=pltpu.VMEM),              # bias   (resident, f32)
            pl.BlockSpec((block_rows, D_f), lambda i: (i, 0)),  # x tile
        ],
        out_specs=pl.BlockSpec((block_rows, D_f), lambda i: (i, 0)),
        compiler_params=pltpu.CompilerParams(
            dimension_semantics=("parallel",),
            vmem_limit_bytes=vmem_limit),
    )(alpha_s, wf, bf, xf)

    if k > 1:
        out = out.reshape(R_f * k, D)
        if pad:
            out = out[:R]
    return out.reshape(orig_shape)


def dyt_ref(x, alpha, weight, bias):
    # Pure-JAX reference matching the PyTorch forward (f32 math).
    return jnp.tanh(alpha * x.astype(jnp.float32)) * weight + bias


if __name__ == "__main__":
    key = jax.random.PRNGKey(0)
    kx, kw, kb, kx2, kw2, kb2 = jax.random.split(key, 6)

    # ---- Test 1: (batch, seq, hidden) f32 with D % 128 == 0 and a ragged row
    # count (R = 18 not a multiple of block_rows) -> exercises the masked
    # partial-last-block path with NO pad / post-slice copies. ----
    B, S, D = 2, 9, 128
    x = jax.random.normal(kx, (B, S, D), dtype=jnp.float32)
    alpha = jnp.ones((1,), jnp.float32) * 0.5      # module init: alpha_init_value=0.5
    weight = jnp.ones((D,), jnp.float32) + 0.01 * jax.random.normal(kw, (D,), jnp.float32)
    bias = jnp.zeros((D,), jnp.float32) + 0.01 * jax.random.normal(kb, (D,), jnp.float32)

    y = jax.block_until_ready(dyt(x, alpha, weight, bias))
    y_ref = dyt_ref(x, alpha[0], weight, bias)
    assert y.shape == x.shape and y.dtype == x.dtype
    assert jnp.allclose(y, y_ref, atol=1e-6, rtol=1e-6), "f32 mismatch vs reference"

    # ---- Test 2: non-128 feature dim + ragged rows + bf16 I/O -> exercises
    # the lane-dense fold (k > 1) with <= k-1 pad rows. ----
    B2, S2, D2 = 3, 5, 40
    x2 = jax.random.normal(kx2, (B2, S2, D2), dtype=jnp.float32).astype(jnp.bfloat16)
    alpha2 = jnp.ones((1,), jnp.float32) * 0.5
    weight2 = (jnp.ones((D2,), jnp.float32)
               + 0.01 * jax.random.normal(kw2, (D2,), jnp.float32)).astype(jnp.bfloat16)
    bias2 = (jnp.zeros((D2,), jnp.float32)
             + 0.01 * jax.random.normal(kb2, (D2,), jnp.float32)).astype(jnp.bfloat16)

    y2 = jax.block_until_ready(dyt(x2, alpha2, weight2, bias2))
    y2_ref = dyt_ref(x2, alpha2[0], weight2.astype(jnp.float32), bias2.astype(jnp.float32))
    assert y2.shape == x2.shape and y2.dtype == x2.dtype
    assert jnp.allclose(y2.astype(jnp.float32), y2_ref, atol=1e-2, rtol=1e-2), \
        "bf16 mismatch vs reference"

    print("KERNEL_OK")
</pallas_src>

<mosaic_0001>
module attributes {stable_mosaic.version = 11 : i64} {
  func.func @dyt_kernel(%arg0: i32, %arg1: memref<1xf32, #tpu.memory_space<smem>>, %arg2: memref<1x128xf32, #tpu.memory_space<vmem>>, %arg3: memref<1x128xf32, #tpu.memory_space<vmem>>, %arg4: memref<8x128xf32, #tpu.memory_space<vmem>>, %arg5: memref<8x128xf32, #tpu.memory_space<vmem>>) attributes {dimension_semantics = [#tpu.dimension_semantics<parallel>], iteration_bounds = array<i64: 3>, scalar_prefetch = 0 : i64, scratch_operands = 0 : i64, tpu.core_type = #tpu.core_type<tc>, window_params = [{transform_indices = @transform_0, window_bounds = array<i64: 1>}, {pipeline_mode = #tpu.pipeline_mode<synchronous>, transform_indices = @transform_1, window_bounds = array<i64: 1, 128>}, {pipeline_mode = #tpu.pipeline_mode<synchronous>, transform_indices = @transform_2, window_bounds = array<i64: 1, 128>}, {transform_indices = @transform_3, window_bounds = array<i64: 8, 128>}, {transform_indices = @transform_4, window_bounds = array<i64: 8, 128>}]} {
    %c0 = arith.constant 0 : index
    %0 = memref.load %arg1[%c0] : memref<1xf32, #tpu.memory_space<smem>>
    %c0_0 = arith.constant 0 : index
    %c0_1 = arith.constant 0 : index
    %1 = vector.load %arg4[%c0_0, %c0_1] : memref<8x128xf32, #tpu.memory_space<vmem>>, vector<8x128xf32>
    %2 = vector.broadcast %0 : f32 to vector<8x128xf32>
    %3 = arith.mulf %2, %1 : vector<8x128xf32>
    %4 = math.tanh %3 : vector<8x128xf32>
    %c0_2 = arith.constant 0 : index
    %c0_3 = arith.constant 0 : index
    %5 = vector.load %arg2[%c0_2, %c0_3] : memref<1x128xf32, #tpu.memory_space<vmem>>, vector<1x128xf32>
    %6 = vector.broadcast %5 : vector<1x128xf32> to vector<8x128xf32>
    %7 = arith.mulf %4, %6 : vector<8x128xf32>
    %c0_4 = arith.constant 0 : index
    %c0_5 = arith.constant 0 : index
    %8 = vector.load %arg3[%c0_4, %c0_5] : memref<1x128xf32, #tpu.memory_space<vmem>>, vector<1x128xf32>
    %9 = vector.broadcast %8 : vector<1x128xf32> to vector<8x128xf32>
    %10 = arith.addf %7, %9 : vector<8x128xf32>
    %c0_6 = arith.constant 0 : index
    %c0_7 = arith.constant 0 : index
    %11 = vector.load %arg5[%c0_6, %c0_7] : memref<8x128xf32, #tpu.memory_space<vmem>>, vector<8x128xf32>
    tpu.vector_store %arg5[%c0_6, %c0_7], %10 {strides = array<i32>} : memref<8x128xf32, #tpu.memory_space<vmem>>, vector<8x128xf32>,
    return
  }
  func.func @transform_0(%arg0: i32) -> i32 {
    %c0_i32 = arith.constant 0 : i32
    %c0_i32_0 = arith.constant 0 : i32
    return %c0_i32 : i32
  }
  func.func @transform_1(%arg0: i32) -> (i32, i32) {
    %c0_i32 = arith.constant 0 : i32
    %c0_i32_0 = arith.constant 0 : i32
    %c0_i32_1 = arith.constant 0 : i32
    return %c0_i32, %c0_i32_0 : i32, i32
  }
  func.func @transform_2(%arg0: i32) -> (i32, i32) {
    %c0_i32 = arith.constant 0 : i32
    %c0_i32_0 = arith.constant 0 : i32
    %c0_i32_1 = arith.constant 0 : i32
    return %c0_i32, %c0_i32_0 : i32, i32
  }
  func.func @transform_3(%arg0: i32) -> (i32, i32) {
    %c0_i32 = arith.constant 0 : i32
    %c0_i32_0 = arith.constant 0 : i32
    return %arg0, %c0_i32 : i32, i32
  }
  func.func @transform_4(%arg0: i32) -> (i32, i32) {
    %c0_i32 = arith.constant 0 : i32
    %c0_i32_0 = arith.constant 0 : i32
    return %arg0, %c0_i32 : i32, i32
  }
}

</mosaic_0001>

<llo_original>
// kernel: tpu_custom_call.1
$region0: #{tpu_custom_call.1}
  #allocation0 [shape = 'u32[]', space=smem, size = 0x4, offset = 0x4, fixed_abs, tag = 'smem constant byte address 0x4 - core index']
  #allocation1 [shape = 'u32[72,128]{1,0:T(1,128)}', space=vmem, size = 0x9000, scoped, tag = 'internal scratch']
  #allocation2 [shape = 'f32[1]{0:T(128)S(6)}', space=smem, size = 0x200, scoped, tag = 'scoped memory for tpu_custom_call.1']
  %s0 = inlined_call_operand.<no memory space> [shape: f32[1], index: 0, kind: input, shape index: {}]
  %s1 = inlined_call_operand.vmem [shape: f32[1,128], index: 1, kind: input, shape index: {}]
  %s2 = inlined_call_operand.vmem [shape: f32[1,128], index: 2, kind: input, shape index: {}]
  %s3 = inlined_call_operand.hbm [shape: f32[18,128], index: 3, kind: input, shape index: {}]
  %s4 = inlined_call_operand.hbm [shape: f32[18,128], index: 4, kind: output, shape index: {}]
  %s5 = sld [smem:[#allocation0]]
  $region53: #{tpu_custom_call.1} parent=0
    _
  %s7 = ssub.s32 1, %s5
  %s8 = scalar_select 0, %s7, %s5
  %9 = sst [smem:[#allocation2]] %s0
  $region1: #{tpu_custom_call.1} parent=0
    #allocation3 [shape = 'u8[8192]{0}', space=vmem, size = 0x2000, scoped, tag = 'input window, operand 3']
    #allocation4 [shape = 's32[2]{0}', space=sflag, size = 0x8, scoped, tag = 'scoped memory for tpu_custom_call.1']
    #allocation5 [shape = 's32[2]{0}', space=sflag, size = 0x8, scoped, tag = 'scoped memory for tpu_custom_call.1']
    #allocation6 [shape = 'u8[8192]{0}', space=vmem, size = 0x2000, scoped, tag = 'output window, operand 0']
    %10 = vsyncpa [#allocation4], 0
    %s11 = scalar_lea.sflag [#allocation4], 1
    %12 = vsyncpa %s11, 0
    %13 = vsyncpa [#allocation5], 0
    %s14 = scalar_lea.sflag [#allocation5], 1
    %15 = vsyncpa %s14, 0
    loop: start=0, step=1, limit=5
    $region2: #{tpu_custom_call.1} parent=1 // loop_pre_header
      _
    $region3: #{tpu_custom_call.1} parent=1 // loop_header
      %s17 = sphi 0, %s21
      %p18 = scmp.ge.s32.totalorder %s17, 5
      %s25 = sphi 0, %s25
      %s27 = sphi 0, %s25
      %s28 = sphi 0, %s27
      %s42 = sphi 0, %s28
      %s46 = sphi 0, %s46
      %s48 = sphi 0, %s46
      %s49 = sphi 0, %s48
      %s63 = sphi 0, %s49
      %s67 = sphi 0, %s67
      %s69 = sphi 0, %s67
      %s70 = sphi 0, %s69
      %s84 = sphi 0, %s70
      %s90 = sphi 0, %s92
      %s93 = sphi 0, %s90
      %s94 = sphi 0, %s93
      %s110 = sphi 0, %s94
      %s116 = sphi 0, %s118
      %s119 = sphi 0, %s116
      %s120 = sphi 0, %s119
      %s136 = sphi 0, %s120
    $region4: #{tpu_custom_call.1} parent=1 // loop_header_branch
      %20 = sbr.rel (%p18) target = $region8
    $region5: #{tpu_custom_call.1} parent=1 // loop_body
      %s22 = ssub.s32 %s17, 1
      %s23 = ssub.s32 %s17, 2
      %s24 = sadd.s32 %s17, 1
      %s26 = sadd.s32 %s25, 1
      %p29 = scmp.eq.s32.totalorder %s17, 2
      %p30 = scmp.ne.s32.totalorder %s25, %s27
      %p31 = scmp.eq.s32.totalorder %s17, 0
      %p32 = por %p30, %p31
      %p33 = scmp.ne.s32.totalorder %s25, %s27
      %p34 = scmp.eq.s32.totalorder %s22, 2
      %p35 = por %p33, %p34
      %p36 = scmp.ne.s32.totalorder %s27, %s28
      %p37 = scmp.eq.s32.totalorder %s22, 0
      %p38 = por %p36, %p37
      %p39 = scmp.ne.s32.totalorder %s27, %s28
      %p40 = scmp.eq.s32.totalorder %s23, 2
      %p41 = por %p39, %p40
      %p43 = scmp.ne.s32.totalorder %s28, %s42
      %p44 = scmp.eq.s32.totalorder %s23, 0
      %p45 = por %p43, %p44
      %s47 = sadd.s32 %s46, 1
      %p50 = scmp.eq.s32.totalorder %s17, 2
      %p51 = scmp.ne.s32.totalorder %s46, %s48
      %p52 = scmp.eq.s32.totalorder %s17, 0
      %p53 = por %p51, %p52
      %p54 = scmp.ne.s32.totalorder %s46, %s48
      %p55 = scmp.eq.s32.totalorder %s22, 2
      %p56 = por %p54, %p55
      %p57 = scmp.ne.s32.totalorder %s48, %s49
      %p58 = scmp.eq.s32.totalorder %s22, 0
      %p59 = por %p57, %p58
      %p60 = scmp.ne.s32.totalorder %s48, %s49
      %p61 = scmp.eq.s32.totalorder %s23, 2
      %p62 = por %p60, %p61
      %p64 = scmp.ne.s32.totalorder %s49, %s63
      %p65 = scmp.eq.s32.totalorder %s23, 0
      %p66 = por %p64, %p65
      %s68 = sadd.s32 %s67, 1
      %p71 = scmp.eq.s32.totalorder %s17, 2
      %p72 = scmp.ne.s32.totalorder %s67, %s69
      %p73 = scmp.eq.s32.totalorder %s17, 0
      %p74 = por %p72, %p73
      %p75 = scmp.ne.s32.totalorder %s67, %s69
      %p76 = scmp.eq.s32.totalorder %s22, 2
      %p77 = por %p75, %p76
      %p78 = scmp.ne.s32.totalorder %s69, %s70
      %p79 = scmp.eq.s32.totalorder %s22, 0
      %p80 = por %p78, %p79
      %p81 = scmp.ne.s32.totalorder %s69, %s70
      %p82 = scmp.eq.s32.totalorder %s23, 2
      %p83 = por %p81, %p82
      %p85 = scmp.ne.s32.totalorder %s70, %s84
      %p86 = scmp.eq.s32.totalorder %s23, 0
      %p87 = por %p85, %p86
      %s88 = ssub.s32 %s17, %s24
      %p89 = scmp.eq.s32.totalorder %s88, 0
      %s91 = sadd.s32 %s90, 1
      %s92 = scalar_select %p89, %s90, %s91
      %p95 = pneg %p89
      %p96 = scmp.eq.s32.totalorder %s17, 2
      %p97 = por %p95, %p96
      %p98 = scmp.ne.s32.totalorder %s90, %s93
      %p99 = scmp.eq.s32.totalorder %s17, 0
      %p100 = por %p98, %p99
      %p101 = scmp.ne.s32.totalorder %s90, %s93
      %p102 = scmp.eq.s32.totalorder %s22, 2
      %p103 = por %p101, %p102
      %p104 = scmp.ne.s32.totalorder %s93, %s94
      %p105 = scmp.eq.s32.totalorder %s22, 0
      %p106 = por %p104, %p105
      %p107 = scmp.ne.s32.totalorder %s93, %s94
      %p108 = scmp.eq.s32.totalorder %s23, 2
      %p109 = por %p107, %p108
      %p111 = scmp.ne.s32.totalorder %s94, %s110
      %p112 = scmp.eq.s32.totalorder %s23, 0
      %p113 = por %p111, %p112
      %s114 = ssub.s32 %s17, %s24
      %p115 = scmp.eq.s32.totalorder %s114, 0
      %s117 = sadd.s32 %s116, 1
      %s118 = scalar_select %p115, %s116, %s117
      %p121 = pneg %p115
      %p122 = scmp.eq.s32.totalorder %s17, 2
      %p123 = por %p121, %p122
      %p124 = scmp.ne.s32.totalorder %s116, %s119
      %p125 = scmp.eq.s32.totalorder %s17, 0
      %p126 = por %p124, %p125
      %p127 = scmp.ne.s32.totalorder %s116, %s119
      %p128 = scmp.eq.s32.totalorder %s22, 2
      %p129 = por %p127, %p128
      %p130 = scmp.ne.s32.totalorder %s119, %s120
      %p131 = scmp.eq.s32.totalorder %s22, 0
      %p132 = por %p130, %p131
      %p133 = scmp.ne.s32.totalorder %s119, %s120
      %p134 = scmp.eq.s32.totalorder %s23, 2
      %p135 = por %p133, %p134
      %p137 = scmp.ne.s32.totalorder %s120, %s136
      %p138 = scmp.eq.s32.totalorder %s23, 0
      %p139 = por %p137, %p138
      %p140 = scmp.le.s32.totalorder 1, %s17
      %p141 = scmp.lt.s32.totalorder %s17, 4
      %p142 = pnand %p140, %p141
      %p143 = pneg %p142
      // Predicated region
      $region9: #{tpu_custom_call.1} parent=5 // pred_check
        _
      $region10: #{tpu_custom_call.1} parent=5 // pred_check_branch
        %145 = sbr.rel (%p142) target = $region12
      $region11: #{tpu_custom_call.1} parent=5 // pred_region
        %s146 = ssub.s32 %s17, 1
        // Predicated region
        $region13: #{tpu_custom_call.1} parent=11 // pred_check
          %p147 = pneg %p38
        $region14: #{tpu_custom_call.1} parent=11 // pred_check_branch
          %149 = sbr.rel (%p147) target = $region16
        $region15: #{tpu_custom_call.1} parent=11 // pred_region
          _
        $region16: #{tpu_custom_call.1} parent=11 // pred_fallthru
          _
        // Predicated region
        $region17: #{tpu_custom_call.1} parent=11 // pred_check
          %p150 = pneg %p59
        $region18: #{tpu_custom_call.1} parent=11 // pred_check_branch
          %152 = sbr.rel (%p150) target = $region20
        $region19: #{tpu_custom_call.1} parent=11 // pred_region
          _
        $region20: #{tpu_custom_call.1} parent=11 // pred_fallthru
          _
        // Predicated region
        $region21: #{tpu_custom_call.1} parent=11 // pred_check
          %p153 = pneg %p80
        $region22: #{tpu_custom_call.1} parent=11 // pred_check_branch
          %155 = sbr.rel (%p153) target = $region24
        $region23: #{tpu_custom_call.1} parent=11 // pred_region
          _
        $region24: #{tpu_custom_call.1} parent=11 // pred_fallthru
          _
      $region12: #{tpu_custom_call.1} parent=5 // pred_fallthru
        _
      %p156 = scmp.lt.s32.totalorder %s17, 3
      // Predicated region
      $region25: #{tpu_custom_call.1} parent=5 // pred_check
        %p157 = pneg %p156
      $region26: #{tpu_custom_call.1} parent=5 // pred_check_branch
        %159 = sbr.rel (%p157) target = $region28
      $region27: #{tpu_custom_call.1} parent=5 // pred_region
        // Predicated region
        $region29: #{tpu_custom_call.1} parent=27 // pred_check
          %p160 = pneg %p100
        $region30: #{tpu_custom_call.1} parent=27 // pred_check_branch
          %162 = sbr.rel (%p160) target = $region32
        $region31: #{tpu_custom_call.1} parent=27 // pred_region
          %s163 = sand.u32 %s90, 1
          %s164 = scalar_lea.sflag [#allocation4], %s163
          %s165 = sand.u32 %s90, 1
          %s166 = smul.addr %s165, 8
          %s167 = scalar_lea.vmem [#allocation3], %s166
          %169 = vsyncadd %s164, 0
          %s170 = smul.addr %s17, 8
          %s171 = scalar_lea.hbm %s3, %s170
          %s173 = sshll.u32 %s171, 4
          %s174 = int_to_ptr.hbm [resolvable:$true] %s173
          %s175 = sshll.u32 %s167, 4
          %s176 = int_to_ptr.vmem [resolvable:$true] %s175
          %178 = dma.hbm_to_vmem [thread:$0]  %s174, 128, %s176, %s164
        $region32: #{tpu_custom_call.1} parent=27 // pred_fallthru
          _
      $region28: #{tpu_custom_call.1} parent=5 // pred_fallthru
        _
      %p179 = scmp.le.s32.totalorder 1, %s17
      %p180 = scmp.lt.s32.totalorder %s17, 4
      %p181 = pnand %p179, %p180
      %p182 = pneg %p181
      // Predicated region
      $region33: #{tpu_custom_call.1} parent=5 // pred_check
        _
      $region34: #{tpu_custom_call.1} parent=5 // pred_check_branch
        %184 = sbr.rel (%p181) target = $region36
      $region35: #{tpu_custom_call.1} parent=5 // pred_region
        %s185 = ssub.s32 %s17, 1
        %s186 = sand.u32 %s93, 1
        %s187 = scalar_lea.sflag [#allocation4], %s186
        %s188 = sand.u32 %s93, 1
        %s189 = smul.addr %s188, 8
        %s190 = scalar_lea.vmem [#allocation3], %s189
        // Predicated region
        $region37: #{tpu_custom_call.1} parent=35 // pred_check
          %p191 = pneg %p106
        $region38: #{tpu_custom_call.1} parent=35 // pred_check_branch
          %193 = sbr.rel (%p191) target = $region40
        $region39: #{tpu_custom_call.1} parent=35 // pred_region
          %195 = dma.done %s187, 128
        $region40: #{tpu_custom_call.1} parent=35 // pred_fallthru
          _
        %p196 = pneg %p38
        %p197 = pneg %p35
        %p198 = pneg %p59
        %p199 = pneg %p56
        %p200 = pneg %p80
        %p201 = pneg %p77
        %s202 = sand.u32 %s93, 1
        %s203 = scalar_lea.sflag [#allocation4], %s202
        %s204 = sand.u32 %s93, 1
        %s205 = smul.addr %s204, 8
        %s206 = scalar_lea.vmem [#allocation3], %s205
        %p207 = pneg %p106
        %p208 = pneg %p103
        %p209 = pneg %p132
        %p210 = pneg %p129
        %s211 = sand.u32 %s119, 1
        %s212 = scalar_lea.sflag [#allocation5], %s211
        %s213 = sand.u32 %s119, 1
        %s214 = smul.addr %s213, 8
        %s215 = scalar_lea.vmem [#allocation6], %s214
        %s216 = sld [smem:[#allocation2]]
        %v217 = vld [vmem:[%s190] sm:$0xff]
        %v218 = vstv %s216
        %v219 = vmul.f32 %v218, %v217
        %v220 = vtanh.pop %v219
        %v221 = vld [vmem:[%s1] sm:$0x1]
        %v223 = vperm.slane %v221, 0
        %v225 = vmul.f32 %v220, %v223
        %v226 = vld [vmem:[%s2] sm:$0x1]
        %v228 = vperm.slane %v226, 0
        %v230 = vadd.f32 %v225, %v228
        %231 = vst [vmem:[%s215] sm:$0xff] %v230
        %s232 = sand.u32 %s119, 1
        %s233 = scalar_lea.sflag [#allocation5], %s232
        %s234 = sand.u32 %s119, 1
        %s235 = smul.addr %s234, 8
        %s236 = scalar_lea.vmem [#allocation6], %s235
        // Predicated region
        $region41: #{tpu_custom_call.1} parent=35 // pred_check
          %p237 = pneg %p129
        $region42: #{tpu_custom_call.1} parent=35 // pred_check_branch
          %239 = sbr.rel (%p237) target = $region44
        $region43: #{tpu_custom_call.1} parent=35 // pred_region
          %241 = vsyncadd %s233, 0
          %s242 = smul.addr %s22, 8
          %s243 = scalar_lea.hbm %s4, %s242
          %s245 = sshll.u32 %s236, 4
          %s246 = int_to_ptr.vmem [resolvable:$true] %s245
          %s247 = sshll.u32 %s243, 4
          %s248 = int_to_ptr.hbm [resolvable:$true] %s247
          %250 = dma.vmem_to_hbm [thread:$0]  %s246, 128, %s248, %s233
        $region44: #{tpu_custom_call.1} parent=35 // pred_fallthru
          _
      $region36: #{tpu_custom_call.1} parent=5 // pred_fallthru
        _
      %p251 = scmp.le.s32.totalorder 2, %s17
      // Predicated region
      $region45: #{tpu_custom_call.1} parent=5 // pred_check
        %p252 = pneg %p251
      $region46: #{tpu_custom_call.1} parent=5 // pred_check_branch
        %254 = sbr.rel (%p252) target = $region48
      $region47: #{tpu_custom_call.1} parent=5 // pred_region
        %s255 = ssub.s32 %s17, 2
        // Predicated region
        $region49: #{tpu_custom_call.1} parent=47 // pred_check
          %p256 = pneg %p135
        $region50: #{tpu_custom_call.1} parent=47 // pred_check_branch
          %258 = sbr.rel (%p256) target = $region52
        $region51: #{tpu_custom_call.1} parent=47 // pred_region
          %s259 = sand.u32 %s120, 1
          %s260 = scalar_lea.sflag [#allocation5], %s259
          %s261 = sand.u32 %s120, 1
          %s262 = smul.addr %s261, 8
          %s263 = scalar_lea.vmem [#allocation6], %s262
          %265 = dma.done %s260, 128
        $region52: #{tpu_custom_call.1} parent=47 // pred_fallthru
          _
      $region48: #{tpu_custom_call.1} parent=5 // pred_fallthru
        _
    $region6: #{tpu_custom_call.1} parent=1 // loop_footer
      %s21 = sadd.s32 1, %s17
    $region7: #{tpu_custom_call.1} parent=1 // loop_footer_branch
      %16 = sbr.rel target = $region3
    $region8: #{tpu_custom_call.1} parent=1 // loop_exit
      _
    %266 = vsyncpa [#allocation4], 1
    %s267 = scalar_lea.sflag [#allocation4], 1
    %268 = vsyncpa %s267, 1
    %269 = vsyncpa [#allocation5], 1
    %s270 = scalar_lea.sflag [#allocation5], 1
    %271 = vsyncpa %s270, 1

</llo_original>
